<compile_context>
chip_gen: v7x
topology: tpu7x:2x2x1
jax: 0.10.0
libtpu: 0.0.40
codegen_flags: <defaults>
</compile_context>

<pallas_src>
import numpy as np
import jax
import jax.numpy as jnp
from jax.experimental import pallas as pl
from jax.experimental.pallas import tpu as pltpu

NJOINTS = 24             # synthetic joint count (SMPL-like, cut_joints=None)
NFEATS = 3               # xyz
FEAT = NJOINTS * NFEATS  # 72
HIDDEN = 32              # kept unpadded per review (padding N=32 -> 128 is waste)
NUM_CLASSES = 4
LANE = 128
C_PAD = LANE             # logits padded to lane width (lane-dense stores)


def _round_up(x, m):
    return ((x + m - 1) // m) * m


def bm_classifier_kernel(x_ref, wv_ref, wf_ref, bf_ref, w2_ref, b2_ref, o_ref):
    # x_ref : [TB, tdim, D]    bf16  subsampled pose params
    # wv_ref: [TB, tdim, 1]    f32   pre-normalized validity weights (masked mean)
    # wf_ref: [D, HIDDEN]      bf16  regressor(+pelvis centering) folded into MLP-1
    # bf_ref: [1, HIDDEN]      f32
    # w2_ref: [HIDDEN, C_PAD]  f32
    # b2_ref: [1, C_PAD]       f32
    # o_ref : [TB, C_PAD]      f32   lane-padded logits
    tb, tdim, d = x_ref.shape

    # single tall MXU pass over all TB*tdim frames (leading-dim merge)
    x = x_ref[...].reshape(tb * tdim, d)
    h = jnp.dot(x, wf_ref[...], preferred_element_type=jnp.float32)
    h = jnp.maximum(h + bf_ref[...], 0.0)                       # [TB*tdim, HIDDEN]

    # valid-masked temporal mean pooling as a VPU/XLU weighted sum
    # (no M=1 matmul / MRF drain per batch element)
    pooled = jnp.sum(h.reshape(tb, tdim, HIDDEN) * wv_ref[...], axis=1)  # [TB, HIDDEN]

    # linear head (tiny; f32 for accuracy)
    logits = jnp.dot(pooled, w2_ref[...], preferred_element_type=jnp.float32)
    o_ref[...] = (logits + b2_ref[...]).astype(o_ref.dtype)


class BMClassifierPallas:
    """Pallas reimplementation of bm_classifier.forward (joints_parallel=True,
    pose_type='smplx'-like, cut_joints=None, center_at_pelvis=True)."""

    def __init__(self, time_dim, proportion, batch_size, pose_dim):
        self.proportion = proportion
        self.bs = batch_size
        self.tdim = int(time_dim * proportion)
        self.pose_dim = pose_dim

        # Deterministic synthetic parameters (stand-in for body model + classifier).
        k = jax.random.PRNGKey(42)
        k1, k2, k3, _ = jax.random.split(k, 4)
        w_bm = 0.1 * jax.random.normal(k1, (pose_dim, FEAT), jnp.float32)
        b_bm = 0.01 * jnp.arange(FEAT, dtype=jnp.float32).reshape(1, FEAT)
        w1 = 0.1 * jax.random.normal(k2, (FEAT, HIDDEN), jnp.float32)
        b1 = jnp.zeros((1, HIDDEN), jnp.float32)
        w2 = 0.1 * jax.random.normal(k3, (HIDDEN, NUM_CLASSES), jnp.float32)
        b2 = jnp.zeros((1, NUM_CLASSES), jnp.float32)

        # Pelvis centering is linear: (xW+b) - (xW+b)S == x(W - WS) + (b - bS).
        s = np.zeros((FEAT, FEAT), np.float32)
        for j in range(NJOINTS):
            for c in range(NFEATS):
                s[c, j * NFEATS + c] = 1.0
        psel = jnp.asarray(s)
        w_eff = w_bm - w_bm @ psel
        b_eff = b_bm - b_bm @ psel

        # Fold the (linear) regressor into MLP layer 1 (exact, f32 on host):
        # relu((x@w_eff + b_eff)@w1 + b1) == relu(x@(w_eff@w1) + (b_eff@w1 + b1))
        self.w_fold = (w_eff @ w1).astype(jnp.bfloat16)            # [pose_dim, HIDDEN]
        self.b_fold = (b_eff @ w1) + b1                            # [1, HIDDEN] f32
        self.w2 = jnp.zeros((HIDDEN, C_PAD), jnp.float32).at[:, :NUM_CLASSES].set(w2)
        self.b2 = jnp.zeros((1, C_PAD), jnp.float32).at[:, :NUM_CLASSES].set(b2)

    # ---- batch-block sizing ----
    def _batch_blocking(self, bs):
        # Target ~512 flattened (batch*time) rows per grid step (saturates the
        # 256-row MXU passes on v6e/v7x and v5e's 128-wide MXU) under a
        # conservative VMEM budget that fits v5e's 16 MiB default scoped VMEM
        # and v7x's 64 MiB physical VMEM without raising vmem_limit_bytes.
        tdim, d = self.tdim, self.pose_dim
        tb = max(1, 512 // max(tdim, 1))
        per_b = tdim * (2 * d * 2 + HIDDEN * 4) + tdim * 4 + C_PAD * 4  # bytes / batch elem
        tb = min(tb, max(1, (4 << 20) // per_b))
        if bs <= tb:
            return bs, bs                                   # single grid step, block == batch
        # multiple grid steps: sublane-dense (multiple-of-8) output blocks and
        # >= 4 steps when the batch allows (v7x megacore work distribution)
        tb = max(8, (min(tb, -(-bs // 4)) // 8) * 8)
        return tb, _round_up(bs, tb)

    # ---- fused body-model + classifier head (single pallas_call) ----
    def _fused(self, xp, wv, tb):
        bs_pad, tdim, d = xp.shape
        return pl.pallas_call(
            bm_classifier_kernel,
            out_shape=jax.ShapeDtypeStruct((bs_pad, C_PAD), jnp.float32),
            grid=(bs_pad // tb,),
            in_specs=[
                pl.BlockSpec((tb, tdim, d), lambda i: (i, 0, 0)),      # x (full-dim minor dims)
                pl.BlockSpec((tb, tdim, 1), lambda i: (i, 0, 0)),      # pooling weights
                pl.BlockSpec((d, HIDDEN), lambda i: (0, 0)),           # folded weights
                pl.BlockSpec((1, HIDDEN), lambda i: (0, 0)),
                pl.BlockSpec((HIDDEN, C_PAD), lambda i: (0, 0)),
                pl.BlockSpec((1, C_PAD), lambda i: (0, 0)),
            ],
            out_specs=pl.BlockSpec((tb, C_PAD), lambda i: (i, 0)),
            compiler_params=pltpu.CompilerParams(
                dimension_semantics=("parallel",)),
        )(xp, wv, self.w_fold, self.b_fold, self.w2, self.b2)

    # ---- forward: mirrors bm_classifier.forward (joints_parallel branch) ----
    def forward(self, x, valid, offset=None):
        b, t, d = x.shape
        period = int(round(1.0 / self.proportion))
        if offset is None:
            # mirrors reference (np.random at trace time); pass an int/traced
            # offset to avoid retraces under jit
            offset = int(np.random.randint(0, period))
        idx = offset + period * jnp.arange(self.tdim)

        # temporal subsample + bf16 operand cast fuse into one gather; no
        # d_pad zero-padding, no separate astype HBM round trip.
        # TODO(synk): the subsample could move fully in-kernel (scalar-prefetch
        # offset + strided pl.ds) so x touches HBM exactly once.
        _x = jnp.take(x, idx, axis=1).astype(jnp.bfloat16)      # [b, tdim, d]
        _valid = jnp.take(valid, idx, axis=1)                   # [b, tdim]

        # pre-normalized masked-mean pooling weights; zero-valid rows give
        # pooled = 0 -> logits = b2 (max(cnt,1) clamp, as before)
        v = _valid.astype(jnp.float32)
        cnt = jnp.sum(v, axis=1, keepdims=True)
        wv = (v / jnp.maximum(cnt, 1.0))[:, :, None]            # [b, tdim, 1]

        tb, bs_pad = self._batch_blocking(b)
        if bs_pad != b:
            _x = jnp.pad(_x, ((0, bs_pad - b), (0, 0), (0, 0)))
            wv = jnp.pad(wv, ((0, bs_pad - b), (0, 0), (0, 0)))

        out = self._fused(_x, wv, tb)                           # [bs_pad, C_PAD]
        return out[:b, :NUM_CLASSES]


if __name__ == "__main__":
    np.random.seed(0)
    key = jax.random.PRNGKey(0)
    B, T, D = 2, 16, 32            # batch, time, pose-parameter dim
    x = jax.random.normal(key, (B, T, D), jnp.float32)
    # validity mask: first 12 of 16 frames valid
    valid = jnp.broadcast_to((jnp.arange(T) < 12).astype(jnp.float32), (B, T))

    model = BMClassifierPallas(time_dim=T, proportion=0.5, batch_size=B, pose_dim=D)
    logits = model.forward(x, valid)
    jax.block_until_ready(logits)
    assert logits.shape == (B, NUM_CLASSES)
    print("KERNEL_OK")
</pallas_src>

<mosaic_0001>
module attributes {stable_mosaic.version = 11 : i64} {
  func.func @bm_classifier_kernel(%arg0: i32, %arg1: memref<2x8x32xbf16, #tpu.memory_space<vmem>>, %arg2: memref<2x8x1xf32, #tpu.memory_space<vmem>>, %arg3: memref<32x32xbf16, #tpu.memory_space<vmem>>, %arg4: memref<1x32xf32, #tpu.memory_space<vmem>>, %arg5: memref<32x128xf32, #tpu.memory_space<vmem>>, %arg6: memref<1x128xf32, #tpu.memory_space<vmem>>, %arg7: memref<2x128xf32, #tpu.memory_space<vmem>>) attributes {dimension_semantics = [#tpu.dimension_semantics<parallel>], iteration_bounds = array<i64: 1>, scalar_prefetch = 0 : i64, scratch_operands = 0 : i64, tpu.core_type = #tpu.core_type<tc>, window_params = [{transform_indices = @transform_0, window_bounds = array<i64: 2, 8, 32>}, {transform_indices = @transform_1, window_bounds = array<i64: 2, 8, 1>}, {pipeline_mode = #tpu.pipeline_mode<synchronous>, transform_indices = @transform_2, window_bounds = array<i64: 32, 32>}, {pipeline_mode = #tpu.pipeline_mode<synchronous>, transform_indices = @transform_3, window_bounds = array<i64: 1, 32>}, {pipeline_mode = #tpu.pipeline_mode<synchronous>, transform_indices = @transform_4, window_bounds = array<i64: 32, 128>}, {pipeline_mode = #tpu.pipeline_mode<synchronous>, transform_indices = @transform_5, window_bounds = array<i64: 1, 128>}, {transform_indices = @transform_6, window_bounds = array<i64: 2, 128>}]} {
    %c0 = arith.constant 0 : index
    %c0_0 = arith.constant 0 : index
    %c0_1 = arith.constant 0 : index
    %0 = vector.load %arg1[%c0, %c0_0, %c0_1] : memref<2x8x32xbf16, #tpu.memory_space<vmem>>, vector<2x8x32xbf16>
    %1 = vector.shape_cast %0 : vector<2x8x32xbf16> to vector<16x32xbf16>
    %c0_2 = arith.constant 0 : index
    %c0_3 = arith.constant 0 : index
    %2 = vector.load %arg3[%c0_2, %c0_3] : memref<32x32xbf16, #tpu.memory_space<vmem>>, vector<32x32xbf16>
    %cst = arith.constant dense<0.000000e+00> : vector<16x32xf32>
    %3 = tpu.matmul %1, %2, %cst {dimension_numbers = #tpu.dot_dimension_numbers<[1], [0], [0], [1], [0, 0, 1, 1], [], []>} : vector<16x32xbf16>, vector<32x32xbf16>, vector<16x32xf32> -> vector<16x32xf32>
    %c0_4 = arith.constant 0 : index
    %c0_5 = arith.constant 0 : index
    %4 = vector.load %arg4[%c0_4, %c0_5] : memref<1x32xf32, #tpu.memory_space<vmem>>, vector<1x32xf32>
    %5 = vector.broadcast %4 : vector<1x32xf32> to vector<16x32xf32>
    %6 = arith.addf %3, %5 : vector<16x32xf32>
    %cst_6 = arith.constant 0.000000e+00 : f32
    %7 = vector.broadcast %cst_6 : f32 to vector<16x32xf32>
    %8 = arith.maximumf %6, %7 : vector<16x32xf32>
    %9 = vector.shape_cast %8 : vector<16x32xf32> to vector<2x8x32xf32>
    %c0_7 = arith.constant 0 : index
    %c0_8 = arith.constant 0 : index
    %c0_9 = arith.constant 0 : index
    %10 = vector.load %arg2[%c0_7, %c0_8, %c0_9] : memref<2x8x1xf32, #tpu.memory_space<vmem>>, vector<2x8x1xf32>
    %11 = vector.broadcast %10 : vector<2x8x1xf32> to vector<2x8x32xf32>
    %12 = arith.mulf %9, %11 : vector<2x8x32xf32>
    %cst_10 = arith.constant dense<0.000000e+00> : vector<2x32xf32>
    %13 = vector.multi_reduction <add>, %12, %cst_10 [1] : vector<2x8x32xf32> to vector<2x32xf32>
    %c0_11 = arith.constant 0 : index
    %c0_12 = arith.constant 0 : index
    %14 = vector.load %arg5[%c0_11, %c0_12] : memref<32x128xf32, #tpu.memory_space<vmem>>, vector<32x128xf32>
    %cst_13 = arith.constant dense<0.000000e+00> : vector<2x128xf32>
    %15 = tpu.matmul %13, %14, %cst_13 {dimension_numbers = #tpu.dot_dimension_numbers<[1], [0], [0], [1], [0, 0, 1, 1], [], []>} : vector<2x32xf32>, vector<32x128xf32>, vector<2x128xf32> -> vector<2x128xf32>
    %c0_14 = arith.constant 0 : index
    %c0_15 = arith.constant 0 : index
    %16 = vector.load %arg6[%c0_14, %c0_15] : memref<1x128xf32, #tpu.memory_space<vmem>>, vector<1x128xf32>
    %17 = vector.broadcast %16 : vector<1x128xf32> to vector<2x128xf32>
    %18 = arith.addf %15, %17 : vector<2x128xf32>
    %c0_16 = arith.constant 0 : index
    %c0_17 = arith.constant 0 : index
    %19 = vector.load %arg7[%c0_16, %c0_17] : memref<2x128xf32, #tpu.memory_space<vmem>>, vector<2x128xf32>
    tpu.vector_store %arg7[%c0_16, %c0_17], %18 {strides = array<i32>} : memref<2x128xf32, #tpu.memory_space<vmem>>, vector<2x128xf32>,
    return
  }
  func.func @transform_0(%arg0: i32) -> (i32, i32, i32) {
    %c0_i32 = arith.constant 0 : i32
    %c0_i32_0 = arith.constant 0 : i32
    %c0_i32_1 = arith.constant 0 : i32
    return %arg0, %c0_i32, %c0_i32_0 : i32, i32, i32
  }
  func.func @transform_1(%arg0: i32) -> (i32, i32, i32) {
    %c0_i32 = arith.constant 0 : i32
    %c0_i32_0 = arith.constant 0 : i32
    %c0_i32_1 = arith.constant 0 : i32
    return %arg0, %c0_i32, %c0_i32_0 : i32, i32, i32
  }
  func.func @transform_2(%arg0: i32) -> (i32, i32) {
    %c0_i32 = arith.constant 0 : i32
    %c0_i32_0 = arith.constant 0 : i32
    %c0_i32_1 = arith.constant 0 : i32
    return %c0_i32, %c0_i32_0 : i32, i32
  }
  func.func @transform_3(%arg0: i32) -> (i32, i32) {
    %c0_i32 = arith.constant 0 : i32
    %c0_i32_0 = arith.constant 0 : i32
    %c0_i32_1 = arith.constant 0 : i32
    return %c0_i32, %c0_i32_0 : i32, i32
  }
  func.func @transform_4(%arg0: i32) -> (i32, i32) {
    %c0_i32 = arith.constant 0 : i32
    %c0_i32_0 = arith.constant 0 : i32
    %c0_i32_1 = arith.constant 0 : i32
    return %c0_i32, %c0_i32_0 : i32, i32
  }
  func.func @transform_5(%arg0: i32) -> (i32, i32) {
    %c0_i32 = arith.constant 0 : i32
    %c0_i32_0 = arith.constant 0 : i32
    %c0_i32_1 = arith.constant 0 : i32
    return %c0_i32, %c0_i32_0 : i32, i32
  }
  func.func @transform_6(%arg0: i32) -> (i32, i32) {
    %c0_i32 = arith.constant 0 : i32
    %c0_i32_0 = arith.constant 0 : i32
    return %arg0, %c0_i32 : i32, i32
  }
}

</mosaic_0001>

<llo_original>
// kernel: tpu_custom_call.1
$region0: #{tpu_custom_call.1}
  #allocation0 [shape = 'u32[]', space=smem, size = 0x4, offset = 0x4, fixed_abs, tag = 'smem constant byte address 0x4 - core index']
  #allocation1 [shape = 'u32[144,128]{1,0:T(1,128)}', space=vmem, size = 0x12000, scoped, tag = 'internal scratch']
  %s0 = inlined_call_operand.hbm [shape: bf16[2,8,32], index: 0, kind: input, shape index: {}]
  %s1 = inlined_call_operand.vmem [shape: f32[2,8,1], index: 1, kind: input, shape index: {}]
  %s2 = inlined_call_operand.hbm [shape: bf16[32,32], index: 2, kind: input, shape index: {}]
  %s3 = inlined_call_operand.vmem [shape: f32[1,32], index: 3, kind: input, shape index: {}]
  %s4 = inlined_call_operand.vmem [shape: f32[32,128], index: 4, kind: input, shape index: {}]
  %s5 = inlined_call_operand.vmem [shape: f32[1,128], index: 5, kind: input, shape index: {}]
  %s6 = inlined_call_operand.hbm [shape: f32[2,128], index: 6, kind: output, shape index: {}]
  %s7 = sld [smem:[#allocation0]]
  $region42: #{tpu_custom_call.1} parent=0
    _
  %s9 = ssub.s32 1, %s7
  %s10 = scalar_select 0, %s9, %s7
  $region1: #{tpu_custom_call.1} parent=0
    #allocation2 [shape = 'u8[4096]{0}', space=vmem, size = 0x1000, scoped, tag = 'input window, operand 0, single buffered']
    #allocation3 [shape = 's32[1]{0}', space=sflag, size = 0x4, scoped, tag = 'scoped memory for tpu_custom_call.1']
    #allocation4 [shape = 's32[1]{0}', space=sflag, size = 0x4, scoped, tag = 'scoped memory for tpu_custom_call.1']
    #allocation5 [shape = 'u8[8192]{0}', space=vmem, size = 0x2000, scoped, tag = 'input window, operand 2, single buffered']
    #allocation6 [shape = 's32[1]{0}', space=sflag, size = 0x4, scoped, tag = 'scoped memory for tpu_custom_call.1']
    #allocation7 [shape = 'u8[1024]{0}', space=vmem, size = 0x400, scoped, tag = 'output window, operand 0, single buffered']
    %11 = vsyncpa [#allocation3], 0
    %12 = vsyncpa [#allocation6], 0
    %13 = vsyncpa [#allocation4], 0
    // Predicated region
    $region2: #{tpu_custom_call.1} parent=1 // pred_check
      _
    $region3: #{tpu_custom_call.1} parent=1 // pred_check_branch
      %15 = sbr.rel (0) target = $region5
    $region4: #{tpu_custom_call.1} parent=1 // pred_region
      %s17 = ssub.s32 128, 128
      %18 = vsyncadd [#allocation3], %s17
      %s19 = sshll.u32 [#allocation2], 4
      %s20 = int_to_ptr.vmem [resolvable:$true] %s19
      %25 = dma.hbm_to_vmem [thread:$0]  %s0, 128, %s20, [#allocation3], 64, 64, 4
    $region5: #{tpu_custom_call.1} parent=1 // pred_fallthru
      _
    // Predicated region
    $region6: #{tpu_custom_call.1} parent=1 // pred_check
      _
    $region7: #{tpu_custom_call.1} parent=1 // pred_check_branch
      %27 = sbr.rel (0) target = $region9
    $region8: #{tpu_custom_call.1} parent=1 // pred_region
      _
    $region9: #{tpu_custom_call.1} parent=1 // pred_fallthru
      _
    // Predicated region
    $region10: #{tpu_custom_call.1} parent=1 // pred_check
      _
    $region11: #{tpu_custom_call.1} parent=1 // pred_check_branch
      %29 = sbr.rel (0) target = $region13
    $region12: #{tpu_custom_call.1} parent=1 // pred_region
      %s31 = ssub.s32 256, 256
      %32 = vsyncadd [#allocation6], %s31
      %s33 = sshll.u32 [#allocation5], 4
      %s34 = int_to_ptr.vmem [resolvable:$true] %s33
      %39 = dma.hbm_to_vmem [thread:$0]  %s2, 256, %s34, [#allocation6], 64, 64, 4
    $region13: #{tpu_custom_call.1} parent=1 // pred_fallthru
      _
    // Predicated region
    $region14: #{tpu_custom_call.1} parent=1 // pred_check
      _
    $region15: #{tpu_custom_call.1} parent=1 // pred_check_branch
      %41 = sbr.rel (0) target = $region17
    $region16: #{tpu_custom_call.1} parent=1 // pred_region
      _
    $region17: #{tpu_custom_call.1} parent=1 // pred_fallthru
      _
    // Predicated region
    $region18: #{tpu_custom_call.1} parent=1 // pred_check
      _
    $region19: #{tpu_custom_call.1} parent=1 // pred_check_branch
      %43 = sbr.rel (0) target = $region21
    $region20: #{tpu_custom_call.1} parent=1 // pred_region
      _
    $region21: #{tpu_custom_call.1} parent=1 // pred_fallthru
      _
    // Predicated region
    $region22: #{tpu_custom_call.1} parent=1 // pred_check
      _
    $region23: #{tpu_custom_call.1} parent=1 // pred_check_branch
      %45 = sbr.rel (0) target = $region25
    $region24: #{tpu_custom_call.1} parent=1 // pred_region
      _
    $region25: #{tpu_custom_call.1} parent=1 // pred_fallthru
      _
    // Predicated region
    $region26: #{tpu_custom_call.1} parent=1 // pred_check
      _
    $region27: #{tpu_custom_call.1} parent=1 // pred_check_branch
      %47 = sbr.rel (0) target = $region29
    $region28: #{tpu_custom_call.1} parent=1 // pred_region
      %48 = dma.done [#allocation3], 128
    $region29: #{tpu_custom_call.1} parent=1 // pred_fallthru
      _
    // Predicated region
    $region30: #{tpu_custom_call.1} parent=1 // pred_check
      _
    $region31: #{tpu_custom_call.1} parent=1 // pred_check_branch
      %50 = sbr.rel (0) target = $region33
    $region32: #{tpu_custom_call.1} parent=1 // pred_region
      %51 = dma.done [#allocation6], 256
    $region33: #{tpu_custom_call.1} parent=1 // pred_fallthru
      _
    %v53 = vld [vmem:[#allocation2] sm:$0xf]
    %v54 = vld [vmem:[#allocation2 + $0x4] sm:$0xf]
    %v55 = vld [vmem:[#allocation5] sm:$0xf]
    %v56 = vld [vmem:[#allocation5 + $0x4] sm:$0xf]
    %v57 = vld [vmem:[#allocation5 + $0x8] sm:$0xf]
    %v58 = vld [vmem:[#allocation5 + $0xc] sm:$0xf]
    %v59 = vld [vmem:[%s3] sm:$0x1]
    %v61 = vlaneseq
    %v62 = vshrl.u32 %v61, 7
    %v63 = vsub.s32 0, %v62
    %v64 = vrot.slane %v59, %v63
    %v68 = vunpack.c.l.b16 %v53
    %v69 = vunpack.c.l.b16 %v54
    %v70 = vpack.c.b16 %v69, %v68
    %v75 = vunpack.c.l.b16 %v55
    %v76 = vunpack.c.l.b16 %v56
    %v77 = vunpack.c.l.b16 %v57
    %v78 = vunpack.c.l.b16 %v58
    %v79 = vpack.c.b16 %v76, %v75
    %v80 = vpack.c.b16 %v78, %v77
    %vm83 = vcmask 261120
    %v85 = vsel %vm83, %v70, 0
    %87 = vmatprep.subr.bf16.mxu0 0
    %88 = vmatpush1.bf16.msra.mxu0 %v79
    %89 = vmatprep.subr.bf16.mxu0 0
    %90 = vmatpush1.bf16.msra.mxu0 %v80
    %91 = vmatprep.subr.bf16.mxu0 0
    %92 = vmatpush1.bf16.msra.mxu0 0
    %93 = vmatprep.subr.bf16.mxu0 0
    %94 = vmatpush1.bf16.msra.mxu0 0
    %95 = vmatprep.subr.bf16.mxu0 0
    %96 = vmatpush1.bf16.msra.mxu0 0
    %97 = vmatprep.subr.bf16.mxu0 0
    %98 = vmatpush1.bf16.msra.mxu0 0
    %99 = vmatprep.subr.bf16.mxu0 0
    %100 = vmatpush1.bf16.msra.mxu0 0
    %101 = vmatprep.subr.bf16.mxu0 0
    %102 = vmatpush1.bf16.msra.mxu0 0
    %103 = vmatprep.subr.bf16.mxu0 0
    %104 = vmatpush1.bf16.msra.mxu0 0
    %105 = vmatprep.subr.bf16.mxu0 0
    %106 = vmatpush1.bf16.msra.mxu0 0
    %107 = vmatprep.subr.bf16.mxu0 0
    %108 = vmatpush1.bf16.msra.mxu0 0
    %109 = vmatprep.subr.bf16.mxu0 0
    %110 = vmatpush1.bf16.msra.mxu0 0
    %111 = vmatprep.subr.bf16.mxu0 0
    %112 = vmatpush1.bf16.msra.mxu0 0
    %113 = vmatprep.subr.bf16.mxu0 0
    %114 = vmatpush1.bf16.msra.mxu0 0
    %115 = vmatprep.subr.bf16.mxu0 0
    %116 = vmatpush1.bf16.msra.mxu0 0
    %117 = vmatprep.subr.bf16.mxu0 0
    %118 = vmatpush1.bf16.msra.mxu0 0
    %119 = vmatprep.mubr.bf16.mxu0 0
    %120 = vmatmul.mubr.bf16.gmra.mrb[0].mxu0 %v85
    %v121 = vpop.f32.mrb[0].mxu0
    %v122 = vadd.f32 %v64, %v121
    %v123 = vpop.f32.mrb[0].mxu0
    %v124 = vpop.f32.mrb[0].mxu0
    %v125 = vadd.f32 %v64, %v124
    %v126 = vpop.f32.mrb[0].mxu0
    %127 = vdwg.mxu0
    %v128 = vmax.f32 %v122, 0.0
    %v129 = vmax.f32 %v125, 0.0
    %v130 = vld [vmem:[%s1] sm:$0xff]
    %v131 = vld [vmem:[%s1 + $0x8] sm:$0xff]
    %133 = vset.pattern.permute.xlu0 0
    %134 = vperm.xlu0 %133, %v130
    %v135 = vpop.permute.xlu0 %134
    %138 = vset.pattern.permute.xlu0 0
    %139 = vperm.xlu0 %138, %v131
    %v140 = vpop.permute.xlu0 %139
    %v142 = vmul.f32 %v128, %v135
    %v143 = vmul.f32 %v129, %v140
    %v144 = vsel %vm83, %v142, 0.0
    %v145 = vrot.slane %v144, 4
    %v146 = vadd.f32 %v144, %v145
    %v147 = vrot.slane %v146, 2
    %v148 = vadd.f32 %v146, %v147
    %v149 = vrot.slane %v148, 1
    %v150 = vadd.f32 %v148, %v149
    %v151 = vsel %vm83, %v143, 0.0
    %v152 = vrot.slane %v151, 4
    %v153 = vadd.f32 %v151, %v152
    %v154 = vrot.slane %v153, 2
    %v155 = vadd.f32 %v153, %v154
    %v156 = vrot.slane %v155, 1
    %v157 = vadd.f32 %v155, %v156
    %v158 = vld [vmem:[%s4] sm:$0xff]
    %v159 = vld [vmem:[%s4 + $0x8] sm:$0xff]
    %v160 = vld [vmem:[%s4 + $0x10] sm:$0xff]
    %v161 = vld [vmem:[%s4 + $0x18] sm:$0xff]
    %v162 = vld [vmem:[%s5] sm:$0x1]
    %v164 = vlaneseq
    %v165 = vshrl.u32 %v164, 7
    %v166 = vsub.s32 0, %v165
    %v167 = vrot.slane %v162, %v166
    %vm171 = vcmask 1041409
    %v172 = vsel %vm171, %v157, %v150
    %v173 = vsel %vm83, %v172, 0
    %175 = vmatprep.subr.mxu0 0.0
    %176 = vmatpush1.msra.mxu0 %v158
    %177 = vmatprep.subr.mxu0 0.0
    %178 = vmatpush1.msra.mxu0 %v159
    %179 = vmatprep.subr.mxu0 0.0
    %180 = vmatpush1.msra.mxu0 %v160
    %181 = vmatprep.subr.mxu0 0.0
    %182 = vmatpush1.msra.mxu0 %v161
    %183 = vmatprep.subr.mxu0 0.0
    %184 = vmatpush1.msra.mxu0 0.0
    %185 = vmatprep.subr.mxu0 0.0
    %186 = vmatpush1.msra.mxu0 0.0
    %187 = vmatprep.subr.mxu0 0.0
    %188 = vmatpush1.msra.mxu0 0.0
    %189 = vmatprep.subr.mxu0 0.0
    %190 = vmatpush1.msra.mxu0 0.0
    %191 = vmatprep.subr.mxu0 0.0
    %192 = vmatpush1.msra.mxu0 0.0
    %193 = vmatprep.subr.mxu0 0.0
    %194 = vmatpush1.msra.mxu0 0.0
    %195 = vmatprep.subr.mxu0 0.0
    %196 = vmatpush1.msra.mxu0 0.0
    %197 = vmatprep.subr.mxu0 0.0
    %198 = vmatpush1.msra.mxu0 0.0
    %199 = vmatprep.subr.mxu0 0.0
    %200 = vmatpush1.msra.mxu0 0.0
    %201 = vmatprep.subr.mxu0 0.0
    %202 = vmatpush1.msra.mxu0 0.0
    %203 = vmatprep.subr.mxu0 0.0
    %204 = vmatpush1.msra.mxu0 0.0
    %205 = vmatprep.subr.mxu0 0.0
    %206 = vmatpush1.msra.mxu0 0.0
    %207 = vmatprep.subr.mxu0 0.0
    %208 = vmatpush1.msra.mxu0 0.0
    %209 = vmatprep.subr.mxu0 0.0
    %210 = vmatpush1.msra.mxu0 0.0
    %211 = vmatprep.subr.mxu0 0.0
    %212 = vmatpush1.msra.mxu0 0.0
    %213 = vmatprep.subr.mxu0 0.0
    %214 = vmatpush1.msra.mxu0 0.0
    %215 = vmatprep.subr.mxu0 0.0
    %216 = vmatpush1.msra.mxu0 0.0
    %217 = vmatprep.subr.mxu0 0.0
    %218 = vmatpush1.msra.mxu0 0.0
    %219 = vmatprep.subr.mxu0 0.0
    %220 = vmatpush1.msra.mxu0 0.0
    %221 = vmatprep.subr.mxu0 0.0
    %222 = vmatpush1.msra.mxu0 0.0
    %223 = vmatprep.subr.mxu0 0.0
    %224 = vmatpush1.msra.mxu0 0.0
    %225 = vmatprep.subr.mxu0 0.0
    %226 = vmatpush1.msra.mxu0 0.0
    %227 = vmatprep.subr.mxu0 0.0
    %228 = vmatpush1.msra.mxu0 0.0
    %229 = vmatprep.subr.mxu0 0.0
    %230 = vmatpush1.msra.mxu0 0.0
    %231 = vmatprep.subr.mxu0 0.0
    %232 = vmatpush1.msra.mxu0 0.0
    %233 = vmatprep.subr.mxu0 0.0
    %234 = vmatpush1.msra.mxu0 0.0
    %235 = vmatprep.subr.mxu0 0.0
    %236 = vmatpush1.msra.mxu0 0.0
    %237 = vmatprep.subr.mxu0 0.0
    %238 = vmatpush1.msra.mxu0 0.0
    %239 = vmatprep.mubr.f32.mxu0 0.0
    %240 = vmatmul.mubr.f32.gmra.mrb[0].mxu0 %v173
    %v241 = vpop.f32.mrb[0].mxu0
    %v242 = vadd.f32 %v167, %v241
    %v243 = vpop.f32.mrb[0].mxu0
    %244 = vdwg.mxu0
    %245 = vst [vmem:[#allocation7] sm:$0x3] %v242
    // Predicated region
    $region34: #{tpu_custom_call.1} parent=1 // pred_check
      _
    $region35: #{tpu_custom_call.1} parent=1 // pred_check_branch
      %247 = sbr.rel (0) target = $region37
    $region36: #{tpu_custom_call.1} parent=1 // pred_region
      %s249 = ssub.s32 32, 32
      %250 = vsyncadd [#allocation4], %s249
      %s252 = sshll.u32 [#allocation7], 4
      %s253 = int_to_ptr.vmem [resolvable:$true] %s252
      %255 = dma.vmem_to_hbm [thread:$0]  %s253, 32, %s6, [#allocation4]
    $region37: #{tpu_custom_call.1} parent=1 // pred_fallthru
      _
    // Predicated region
    $region38: #{tpu_custom_call.1} parent=1 // pred_check
      _
    $region39: #{tpu_custom_call.1} parent=1 // pred_check_branch
      %257 = sbr.rel (0) target = $region41
    $region40: #{tpu_custom_call.1} parent=1 // pred_region
      %258 = dma.done [#allocation4], 32
    $region41: #{tpu_custom_call.1} parent=1 // pred_fallthru
      _
    %259 = vsyncpa [#allocation3], 1
    %260 = vsyncpa [#allocation6], 1
    %261 = vsyncpa [#allocation4], 1

</llo_original>
